<compile_context>
chip_gen: v7x
topology: tpu7x:2x2x1
jax: 0.10.0
libtpu: 0.0.40
codegen_flags: <defaults>
</compile_context>

<pallas_src>
import functools

import jax
import jax.numpy as jnp
from jax import lax
from jax.experimental import pallas as pl
from jax.experimental.pallas import tpu as pltpu


def _layernorm_q_kernel(x_ref, w_ref, b_ref, o_ref, *, eps):
    # x_ref: (tm, dim) native dtype ; w_ref/b_ref: (1, dim) f32 ; o_ref: (tm, dim) int8
    x = x_ref[...].astype(jnp.float32)           # matches `x.to(self.weight.dtype)`
    mean = jnp.mean(x, axis=-1, keepdims=True)
    xc = x - mean
    var = jnp.mean(xc * xc, axis=-1, keepdims=True)
    rstd = lax.rsqrt(var + eps)                  # EUP
    y = xc * rstd * w_ref[...] + b_ref[...]
    # __float2int_rn-style round-to-nearest-even, then saturate to int8 range.
    o_ref[...] = jnp.clip(jnp.rint(y), -128.0, 127.0).astype(jnp.int8)


def _vmem_capacity_bytes():
    try:
        return int(pltpu.get_tpu_info().vmem_capacity_bytes)
    except Exception:
        return 64 * 1024 * 1024  # conservative default (v7x per-TensorCore VMEM)


def _pick_row_tile(m, dim, in_itemsize, tile_budget_bytes, block_rows):
    # Per-row VMEM footprint: double-buffered input + double-buffered int8
    # output + ~3 live f32 temporaries in the kernel body.
    bytes_per_row = dim * (2 * in_itemsize + 2 * 1 + 3 * 4)
    tm = min(block_rows, max(32, tile_budget_bytes // max(1, bytes_per_row)))
    tm = max(32, (tm // 32) * 32)        # multiple of 32 -> dense int8 sublane tiles
    if tm >= m:
        if m >= 64:
            # Keep at least 2 grid steps so both v7x TensorCores get rows.
            half = -(-m // 2)
            tm = min(m, ((half + 31) // 32) * 32)
        else:
            tm = m  # full-extent block (exempt from the (8/32, 128) tiling rule)
    return tm


def layernorm_q(x, weight, bias, eps=1e-5, *, block_rows=512):
    """x: (..., dim) any float dtype; weight/bias: (dim,) f32. Returns int8 of x.shape."""
    orig_shape = x.shape
    dim = orig_shape[-1]
    assert weight.shape == (dim,) and bias.shape == (dim,)

    # Keep x in its native dtype; the f32 cast happens inside the kernel so we
    # never pay an extra HBM pass for an up-cast copy.
    x2 = x.reshape(-1, dim)
    m = x2.shape[0]

    w2 = weight.astype(jnp.float32).reshape(1, dim)
    b2 = bias.astype(jnp.float32).reshape(1, dim)

    vmem_cap = _vmem_capacity_bytes()
    vmem_limit = max(32 * 1024 * 1024, min(int(0.75 * vmem_cap), 96 * 1024 * 1024))
    tm = _pick_row_tile(m, dim, x2.dtype.itemsize, vmem_limit // 2, block_rows)
    grid = (pl.cdiv(m, tm),)  # ragged last block: Pallas masks the edge writeback

    kernel = functools.partial(_layernorm_q_kernel, eps=float(eps))

    out = pl.pallas_call(
        kernel,
        out_shape=jax.ShapeDtypeStruct((m, dim), jnp.int8),
        grid_spec=pltpu.PrefetchScalarGridSpec(
            num_scalar_prefetch=0,
            grid=grid,
            in_specs=[
                pl.BlockSpec((tm, dim), lambda i: (i, 0)),
                pl.BlockSpec((1, dim), lambda i: (0, 0)),
                pl.BlockSpec((1, dim), lambda i: (0, 0)),
            ],
            out_specs=pl.BlockSpec((tm, dim), lambda i: (i, 0)),
        ),
        compiler_params=pltpu.CompilerParams(
            dimension_semantics=("parallel",),
            vmem_limit_bytes=vmem_limit,
        ),
    )(x2, w2, b2)

    return out.reshape(orig_shape)


class LayerNormQ:
    """JAX mirror of triton_int LayerNormQ (buffers weight=ones, bias=zeros)."""

    def __init__(self, dim, eps=1e-5):
        self.input_scale = 1.0
        self.eps = eps
        self.weight = jnp.ones((dim,), dtype=jnp.float32)
        self.bias = jnp.zeros((dim,), dtype=jnp.float32)

    def __call__(self, x):
        return layernorm_q(x, self.weight, self.bias, self.eps)


def _reference(x, weight, bias, eps):
    xf = x.astype(jnp.float32)
    mean = jnp.mean(xf, axis=-1, keepdims=True)
    var = jnp.mean((xf - mean) ** 2, axis=-1, keepdims=True)
    y = (xf - mean) * lax.rsqrt(var + eps) * weight + bias
    return jnp.clip(jnp.rint(y), -128, 127).astype(jnp.int8)


if __name__ == "__main__":
    key = jax.random.PRNGKey(0)
    batch, seq, hidden = 2, 8, 32
    k0, k1, k2 = jax.random.split(key, 3)

    x = jax.random.normal(k0, (batch, seq, hidden), dtype=jnp.float32) * 10.0

    module = LayerNormQ(hidden, eps=1e-5)
    # Deterministic non-trivial params (as if produced by from_float / output_scale).
    module.weight = (1.0 + 0.05 * jax.random.normal(k1, (hidden,), dtype=jnp.float32)) * 12.0
    module.bias = 0.1 * jax.random.normal(k2, (hidden,), dtype=jnp.float32) * 12.0

    out = jax.block_until_ready(module(x))
    assert out.shape == (batch, seq, hidden) and out.dtype == jnp.int8

    ref = _reference(x, module.weight, module.bias, module.eps)
    assert jnp.max(jnp.abs(out.astype(jnp.int32) - ref.astype(jnp.int32))) <= 1

    # Native-dtype (bf16) path: input is NOT upcast in the wrapper; the kernel
    # casts to f32 internally, matching `x.to(self.weight.dtype)`.
    x_bf16 = x.astype(jnp.bfloat16)
    out_bf16 = jax.block_until_ready(module(x_bf16))
    ref_bf16 = _reference(x_bf16, module.weight, module.bias, module.eps)
    assert out_bf16.dtype == jnp.int8
    assert jnp.max(jnp.abs(out_bf16.astype(jnp.int32) - ref_bf16.astype(jnp.int32))) <= 1

    print("KERNEL_OK")
</pallas_src>

<mosaic_0001>
module attributes {stable_mosaic.version = 11 : i64} {
  func.func @_layernorm_q_kernel(%arg0: i32, %arg1: memref<16x32xf32, #tpu.memory_space<vmem>>, %arg2: memref<1x32xf32, #tpu.memory_space<vmem>>, %arg3: memref<1x32xf32, #tpu.memory_space<vmem>>, %arg4: memref<16x32xi8, #tpu.memory_space<vmem>>) attributes {dimension_semantics = [#tpu.dimension_semantics<parallel>], iteration_bounds = array<i64: 1>, scalar_prefetch = 0 : i64, scratch_operands = 0 : i64, tpu.core_type = #tpu.core_type<tc>, window_params = [{transform_indices = @transform_0, window_bounds = array<i64: 16, 32>}, {pipeline_mode = #tpu.pipeline_mode<synchronous>, transform_indices = @transform_1, window_bounds = array<i64: 1, 32>}, {pipeline_mode = #tpu.pipeline_mode<synchronous>, transform_indices = @transform_2, window_bounds = array<i64: 1, 32>}, {transform_indices = @transform_3, window_bounds = array<i64: 16, 32>}]} {
    %c0 = arith.constant 0 : index
    %c0_0 = arith.constant 0 : index
    %0 = vector.load %arg1[%c0, %c0_0] : memref<16x32xf32, #tpu.memory_space<vmem>>, vector<16x32xf32>
    %cst = arith.constant dense<0.000000e+00> : vector<16xf32>
    %1 = vector.multi_reduction <add>, %0, %cst [1] : vector<16x32xf32> to vector<16xf32>
    %2 = vector.shape_cast %1 : vector<16xf32> to vector<16x1xf32>
    %cst_1 = arith.constant 3.200000e+01 : f32
    %3 = vector.broadcast %cst_1 : f32 to vector<16x1xf32>
    %4 = arith.divf %2, %3 : vector<16x1xf32>
    %5 = vector.broadcast %4 : vector<16x1xf32> to vector<16x32xf32>
    %6 = arith.subf %0, %5 : vector<16x32xf32>
    %7 = arith.mulf %6, %6 : vector<16x32xf32>
    %cst_2 = arith.constant dense<0.000000e+00> : vector<16xf32>
    %8 = vector.multi_reduction <add>, %7, %cst_2 [1] : vector<16x32xf32> to vector<16xf32>
    %9 = vector.shape_cast %8 : vector<16xf32> to vector<16x1xf32>
    %cst_3 = arith.constant 3.200000e+01 : f32
    %10 = vector.broadcast %cst_3 : f32 to vector<16x1xf32>
    %11 = arith.divf %9, %10 : vector<16x1xf32>
    %cst_4 = arith.constant 9.99999974E-6 : f32
    %12 = vector.broadcast %cst_4 : f32 to vector<16x1xf32>
    %13 = arith.addf %11, %12 : vector<16x1xf32>
    %14 = math.rsqrt %13 : vector<16x1xf32>
    %15 = vector.broadcast %14 : vector<16x1xf32> to vector<16x32xf32>
    %16 = arith.mulf %6, %15 : vector<16x32xf32>
    %c0_5 = arith.constant 0 : index
    %c0_6 = arith.constant 0 : index
    %17 = vector.load %arg2[%c0_5, %c0_6] : memref<1x32xf32, #tpu.memory_space<vmem>>, vector<1x32xf32>
    %18 = vector.broadcast %17 : vector<1x32xf32> to vector<16x32xf32>
    %19 = arith.mulf %16, %18 : vector<16x32xf32>
    %c0_7 = arith.constant 0 : index
    %c0_8 = arith.constant 0 : index
    %20 = vector.load %arg3[%c0_7, %c0_8] : memref<1x32xf32, #tpu.memory_space<vmem>>, vector<1x32xf32>
    %21 = vector.broadcast %20 : vector<1x32xf32> to vector<16x32xf32>
    %22 = arith.addf %19, %21 : vector<16x32xf32>
    %23 = math.roundeven %22 : vector<16x32xf32>
    %cst_9 = arith.constant -1.280000e+02 : f32
    %cst_10 = arith.constant 1.270000e+02 : f32
    %24 = vector.broadcast %cst_9 : f32 to vector<16x32xf32>
    %25 = arith.maximumf %24, %23 : vector<16x32xf32>
    %26 = vector.broadcast %cst_10 : f32 to vector<16x32xf32>
    %27 = arith.minimumf %26, %25 : vector<16x32xf32>
    %28 = arith.fptosi %27 : vector<16x32xf32> to vector<16x32xi8>
    %c0_11 = arith.constant 0 : index
    %c0_12 = arith.constant 0 : index
    %29 = vector.load %arg4[%c0_11, %c0_12] : memref<16x32xi8, #tpu.memory_space<vmem>>, vector<16x32xi8>
    tpu.vector_store %arg4[%c0_11, %c0_12], %28 {strides = array<i32>} : memref<16x32xi8, #tpu.memory_space<vmem>>, vector<16x32xi8>,
    return
  }
  func.func @transform_0(%arg0: i32) -> (i32, i32) {
    %c0_i32 = arith.constant 0 : i32
    %c0_i32_0 = arith.constant 0 : i32
    return %arg0, %c0_i32 : i32, i32
  }
  func.func @transform_1(%arg0: i32) -> (i32, i32) {
    %c0_i32 = arith.constant 0 : i32
    %c0_i32_0 = arith.constant 0 : i32
    %c0_i32_1 = arith.constant 0 : i32
    return %c0_i32, %c0_i32_0 : i32, i32
  }
  func.func @transform_2(%arg0: i32) -> (i32, i32) {
    %c0_i32 = arith.constant 0 : i32
    %c0_i32_0 = arith.constant 0 : i32
    %c0_i32_1 = arith.constant 0 : i32
    return %c0_i32, %c0_i32_0 : i32, i32
  }
  func.func @transform_3(%arg0: i32) -> (i32, i32) {
    %c0_i32 = arith.constant 0 : i32
    %c0_i32_0 = arith.constant 0 : i32
    return %arg0, %c0_i32 : i32, i32
  }
}

</mosaic_0001>

<llo_original>
// kernel: tpu_custom_call.1
$region0: #{tpu_custom_call.1}
  #allocation0 [shape = 'u32[]', space=smem, size = 0x4, offset = 0x4, fixed_abs, tag = 'smem constant byte address 0x4 - core index']
  #allocation1 [shape = 'u32[144,128]{1,0:T(1,128)}', space=vmem, size = 0x12000, scoped, tag = 'internal scratch']
  %s0 = inlined_call_operand.hbm [shape: f32[16,32], index: 0, kind: input, shape index: {}]
  %s1 = inlined_call_operand.vmem [shape: f32[1,32], index: 1, kind: input, shape index: {}]
  %s2 = inlined_call_operand.vmem [shape: f32[1,32], index: 2, kind: input, shape index: {}]
  %s3 = inlined_call_operand.hbm [shape: s8[16,32], index: 3, kind: output, shape index: {}]
  %s4 = sld [smem:[#allocation0]]
  $region26: #{tpu_custom_call.1} parent=0
    _
  %s6 = ssub.s32 1, %s4
  %s7 = scalar_select 0, %s6, %s4
  $region1: #{tpu_custom_call.1} parent=0
    #allocation2 [shape = 'u8[8192]{0}', space=vmem, size = 0x2000, scoped, tag = 'input window, operand 0, single buffered']
    #allocation3 [shape = 's32[1]{0}', space=sflag, size = 0x4, scoped, tag = 'scoped memory for tpu_custom_call.1']
    #allocation4 [shape = 's32[1]{0}', space=sflag, size = 0x4, scoped, tag = 'scoped memory for tpu_custom_call.1']
    #allocation5 [shape = 'u8[2048]{0}', space=vmem, size = 0x800, scoped, tag = 'output window, operand 0, single buffered']
    %8 = vsyncpa [#allocation3], 0
    %9 = vsyncpa [#allocation4], 0
    // Predicated region
    $region2: #{tpu_custom_call.1} parent=1 // pred_check
      _
    $region3: #{tpu_custom_call.1} parent=1 // pred_check_branch
      %11 = sbr.rel (0) target = $region5
    $region4: #{tpu_custom_call.1} parent=1 // pred_region
      %s13 = ssub.s32 256, 256
      %14 = vsyncadd [#allocation3], %s13
      %s15 = sshll.u32 [#allocation2], 4
      %s16 = int_to_ptr.vmem [resolvable:$true] %s15
      %21 = dma.hbm_to_vmem [thread:$0]  %s0, 256, %s16, [#allocation3], 128, 128, 8
    $region5: #{tpu_custom_call.1} parent=1 // pred_fallthru
      _
    // Predicated region
    $region6: #{tpu_custom_call.1} parent=1 // pred_check
      _
    $region7: #{tpu_custom_call.1} parent=1 // pred_check_branch
      %23 = sbr.rel (0) target = $region9
    $region8: #{tpu_custom_call.1} parent=1 // pred_region
      _
    $region9: #{tpu_custom_call.1} parent=1 // pred_fallthru
      _
    // Predicated region
    $region10: #{tpu_custom_call.1} parent=1 // pred_check
      _
    $region11: #{tpu_custom_call.1} parent=1 // pred_check_branch
      %25 = sbr.rel (0) target = $region13
    $region12: #{tpu_custom_call.1} parent=1 // pred_region
      _
    $region13: #{tpu_custom_call.1} parent=1 // pred_fallthru
      _
    // Predicated region
    $region14: #{tpu_custom_call.1} parent=1 // pred_check
      _
    $region15: #{tpu_custom_call.1} parent=1 // pred_check_branch
      %27 = sbr.rel (0) target = $region17
    $region16: #{tpu_custom_call.1} parent=1 // pred_region
      %28 = dma.done [#allocation3], 256
    $region17: #{tpu_custom_call.1} parent=1 // pred_fallthru
      _
    %v29 = vld [vmem:[#allocation2] sm:$0xff]
    %v30 = vld [vmem:[#allocation2 + $0x8] sm:$0xff]
    %vm31 = vcmask 261120
    %v32 = vsel %vm31, %v29, 0.0
    %33 = vadd.xlane.f32.xlu0 %v32
    %v34 = vpop.xlane.xlu0 %33
    %v35 = vsel %vm31, %v30, 0.0
    %36 = vadd.xlane.f32.xlu0 %v35
    %v37 = vpop.xlane.xlu0 %36
    %v38 = vrcp.pop 32.0
    %v39 = vmul.f32 %v34, %v38
    %v40 = vmul.f32 %v37, %v38
    %v41 = vsub.f32 %v29, %v39
    %v42 = vsub.f32 %v30, %v40
    %v43 = vmul.f32 %v41, %v41
    %v44 = vmul.f32 %v42, %v42
    %v45 = vsel %vm31, %v43, 0.0
    %46 = vadd.xlane.f32.xlu0 %v45
    %v47 = vpop.xlane.xlu0 %46
    %v48 = vsel %vm31, %v44, 0.0
    %49 = vadd.xlane.f32.xlu0 %v48
    %v50 = vpop.xlane.xlu0 %49
    %v51 = vmul.f32 %v47, %v38
    %v52 = vmul.f32 %v50, %v38
    %v53 = vadd.f32 %v51, 1e-05
    %v54 = vadd.f32 %v52, 1e-05
    %v55 = vrsqrt.pop %v53
    %v56 = vrsqrt.pop %v54
    %v57 = vmul.f32 %v41, %v55
    %v58 = vmul.f32 %v42, %v56
    %v59 = vld [vmem:[%s1] sm:$0x1]
    %v61 = vlaneseq
    %v62 = vshrl.u32 %v61, 7
    %v63 = vsub.s32 0, %v62
    %v64 = vrot.slane %v59, %v63
    %v66 = vmul.f32 %v57, %v64
    %v67 = vmul.f32 %v58, %v64
    %v68 = vld [vmem:[%s2] sm:$0x1]
    %v70 = vlaneseq
    %v71 = vshrl.u32 %v70, 7
    %v72 = vsub.s32 0, %v71
    %v73 = vrot.slane %v68, %v72
    %v75 = vadd.f32 %v66, %v73
    %v76 = vadd.f32 %v67, %v73
    %v77 = vround.ne.pseudo %v75
    %v78 = vround.ne.pseudo %v76
    %v79 = vmax.f32 %v77, -128.0
    %v80 = vmax.f32 %v78, -128.0
    %v81 = vmin.f32 %v79, 127.0
    %v82 = vmin.f32 %v80, 127.0
    %v83 = vtrunc.f32 %v81
    %v84 = vtrunc.f32 %v82
    %v85 = vpack.c.f32.eXmY %v83, %v84, 312
    %v89 = vpack.c.b8 %v85, %v85
    %v91 = vunpack.c.0.s8 %v89
    %v92 = vunpack.c.1.s8 %v89
    %v93 = vpack.c.b16 %v91, %v91
    %v94 = vpack.c.b8 %v93, %v93
    %v95 = vpack.c.b16 %v92, %v92
    %v96 = vpack.c.b8 %v95, %v95
    %vm97 = vcmask 254976
    %98 = vst.msk [vmem:[#allocation5] sm:$0x3] %vm97, %v94
    %99 = vst.msk [vmem:[#allocation5 + $0x2] sm:$0x3] %vm97, %v96
    // Predicated region
    $region18: #{tpu_custom_call.1} parent=1 // pred_check
      _
    $region19: #{tpu_custom_call.1} parent=1 // pred_check_branch
      %101 = sbr.rel (0) target = $region21
    $region20: #{tpu_custom_call.1} parent=1 // pred_region
      %s103 = ssub.s32 64, 64
      %104 = vsyncadd [#allocation4], %s103
      %s105 = sshll.u32 [#allocation5], 4
      %s106 = int_to_ptr.vmem [resolvable:$true] %s105
      %111 = dma.vmem_to_hbm [thread:$0]  %s106, 64, %s3, [#allocation4], 32, 32, 2
    $region21: #{tpu_custom_call.1} parent=1 // pred_fallthru
      _
    // Predicated region
    $region22: #{tpu_custom_call.1} parent=1 // pred_check
      _
    $region23: #{tpu_custom_call.1} parent=1 // pred_check_branch
      %113 = sbr.rel (0) target = $region25
    $region24: #{tpu_custom_call.1} parent=1 // pred_region
      %114 = dma.done [#allocation4], 64
    $region25: #{tpu_custom_call.1} parent=1 // pred_fallthru
      _
    %115 = vsyncpa [#allocation3], 1
    %116 = vsyncpa [#allocation4], 1

</llo_original>
